<compile_context>
chip_gen: v5e
topology: v5e:2x2
jax: 0.10.0
libtpu: 0.0.40
codegen_flags: <defaults>
</compile_context>

<pallas_src>
import jax
import jax.numpy as jnp
from jax.experimental import pallas as pl
from jax.experimental.pallas import tpu as pltpu


BN_EPS = 1e-5  # nn.BatchNorm1d default


def _round_up(x, m):
    return (x + m - 1) // m * m


# ------------------------------- kernel -------------------------------------

def classifier_kernel(x_ref, w1_ref, b1_ref, w2_ref, b2_ref, w3_ref, b3_ref,
                      o_ref, h_ref):
    """Fused 3-layer MLP for one (row-tile, vocab-tile) grid point."""
    # Layers 1 & 2 are vocab-tile invariant: compute once per row tile and
    # keep the bf16 hidden activation resident in VMEM scratch across j.
    @pl.when(pl.program_id(1) == 0)
    def _():
        x = x_ref[...].astype(jnp.bfloat16)                       # (tm, E)
        h = jnp.dot(x, w1_ref[...], preferred_element_type=jnp.float32)
        h = jnp.maximum(h + b1_ref[...], 0.0)                     # BN folded
        h = jnp.dot(h.astype(jnp.bfloat16), w2_ref[...],
                    preferred_element_type=jnp.float32)
        h = jnp.maximum(h + b2_ref[...], 0.0)
        h_ref[...] = h.astype(jnp.bfloat16)
    # TODO(synk): Dropout is identity here (drop_p=0 / inference mode).

    # Output projection for this (row, vocab) tile.
    out = jnp.dot(h_ref[...], w3_ref[...], preferred_element_type=jnp.float32)
    o_ref[...] = (out + b3_ref[...]).astype(o_ref.dtype)


# ---------------------- one-time parameter preparation ----------------------

def prepare_classifier_params(params, *, eps=BN_EPS, max_vocab_tile=512):
    """Fold BN into the Linears, pad to lane-dense shapes, cast weights bf16."""
    E, H = params["w1"].shape
    V = params["w3"].shape[1]

    # Inference BatchNorm folded into the preceding Linear (exact).
    s1 = params["bn1_g"] * jax.lax.rsqrt(params["bn1_var"] + eps)
    w1 = params["w1"] * s1[None, :]
    b1 = (params["b1"] - params["bn1_mean"]) * s1 + params["bn1_b"]
    s2 = params["bn2_g"] * jax.lax.rsqrt(params["bn2_var"] + eps)
    w2 = params["w2"] * s2[None, :]
    b2 = (params["b2"] - params["bn2_mean"]) * s2 + params["bn2_b"]
    w3, b3 = params["w3"], params["b3"]

    E_pad = _round_up(E, 128)
    H_pad = _round_up(H, 128)
    V_pad = _round_up(V, 128)
    tn = min(max_vocab_tile, V_pad)        # vocab tile (multiple of 128)
    V_pad = _round_up(V_pad, tn)

    def pad_mat(w, r, c):
        return jnp.pad(w, ((0, r - w.shape[0]), (0, c - w.shape[1]))
                       ).astype(jnp.bfloat16)

    def pad_vec(v, c):
        return jnp.pad(v.reshape(1, -1), ((0, 0), (0, c - v.shape[0]))
                       ).astype(jnp.float32)

    # Padded columns/rows are zero, so padded hidden/vocab lanes stay exactly
    # zero through bias + ReLU and are sliced off at the end.
    return dict(
        w1=pad_mat(w1, E_pad, H_pad), b1=pad_vec(b1, H_pad),
        w2=pad_mat(w2, H_pad, H_pad), b2=pad_vec(b2, H_pad),
        w3=pad_mat(w3, H_pad, V_pad), b3=pad_vec(b3, V_pad),
        dims=dict(E=E, H=H, V=V, E_pad=E_pad, H_pad=H_pad, V_pad=V_pad, tn=tn),
    )


# ------------------------------- forward ------------------------------------

def classifier_forward(x, prep, *, max_row_tile=512):
    """Run the fused Classifier MLP with a single Pallas kernel.

    x: (B, emb_size) float32.  `prep` comes from prepare_classifier_params.
    Returns (B, n_vocab) float32.
    """
    d = prep["dims"]
    B, E = x.shape
    assert E == d["E"], "embedding size mismatch"
    E_pad, H_pad, V_pad, tn = d["E_pad"], d["H_pad"], d["V_pad"], d["tn"]

    # Row tiling: 8-aligned, and split into >= 2 tiles when possible so both
    # TensorCores are used on v7x; large batches use max_row_tile rows.
    B_pad = _round_up(B, 8)
    if B_pad >= 2 * max_row_tile:
        tm = max_row_tile
    else:
        tm = min(max_row_tile, _round_up(pl.cdiv(B_pad, 2), 8))
    B_pad = _round_up(B_pad, tm)

    x_p = jnp.pad(x, ((0, B_pad - B), (0, E_pad - E)))

    grid = (B_pad // tm, V_pad // tn)

    in_specs = [
        # activations: row tile, invariant across the vocab axis
        pl.BlockSpec((tm, E_pad), lambda i, j: (i, 0)),
        # grid-invariant weights / biases: single-buffered
        pl.BlockSpec((E_pad, H_pad), lambda i, j: (0, 0),
                     pipeline_mode=pl.Buffered(1)),
        pl.BlockSpec((1, H_pad), lambda i, j: (0, 0),
                     pipeline_mode=pl.Buffered(1)),
        pl.BlockSpec((H_pad, H_pad), lambda i, j: (0, 0),
                     pipeline_mode=pl.Buffered(1)),
        pl.BlockSpec((1, H_pad), lambda i, j: (0, 0),
                     pipeline_mode=pl.Buffered(1)),
        # vocab-tiled output projection (changes with j -> default 2 buffers)
        pl.BlockSpec((H_pad, tn), lambda i, j: (0, j)),
        pl.BlockSpec((1, tn), lambda i, j: (0, j)),
    ]
    out_spec = pl.BlockSpec((tm, tn), lambda i, j: (i, j))

    # Explicit VMEM budget from actual buffer sizes (+ headroom), capped at
    # the smallest per-TC VMEM across generations (64 MiB on v7x).
    vmem_bytes = (
        2 * tm * E_pad * 4                       # x tile, double buffered
        + (E_pad * H_pad * 2 + H_pad * 4)        # w1 (bf16) + b1, 1 buffer
        + (H_pad * H_pad * 2 + H_pad * 4)        # w2 (bf16) + b2, 1 buffer
        + 2 * (H_pad * tn * 2 + tn * 4)          # w3 (bf16) + b3, 2 buffers
        + 2 * tm * tn * 4                        # output tile, 2 buffers
        + tm * H_pad * 2                         # hidden bf16 scratch
    )
    vmem_limit = min(max(int(vmem_bytes * 1.3) + (2 << 20), 16 << 20), 64 << 20)

    out = pl.pallas_call(
        classifier_kernel,
        out_shape=jax.ShapeDtypeStruct((B_pad, V_pad), x.dtype),
        grid_spec=pltpu.PrefetchScalarGridSpec(
            num_scalar_prefetch=0,
            grid=grid,
            in_specs=in_specs,
            out_specs=out_spec,
            scratch_shapes=[pltpu.VMEM((tm, H_pad), jnp.bfloat16)],
        ),
        compiler_params=pltpu.CompilerParams(
            dimension_semantics=("parallel", "arbitrary"),
            vmem_limit_bytes=vmem_limit,
        ),
    )(x_p, prep["w1"], prep["b1"], prep["w2"], prep["b2"],
      prep["w3"], prep["b3"])

    return out[:B, :d["V"]]


# ----------------------------- parameter init -------------------------------

def _linear_params(key, fan_in, fan_out):
    # nn.Linear default init: U(-1/sqrt(fan_in), 1/sqrt(fan_in)).
    kw, kb = jax.random.split(key)
    bound = 1.0 / jnp.sqrt(jnp.float32(fan_in))
    w = jax.random.uniform(kw, (fan_in, fan_out), jnp.float32, -bound, bound)
    b = jax.random.uniform(kb, (fan_out,), jnp.float32, -bound, bound)
    return w, b


def init_classifier_params(key, emb_size, n_vocab, h_size):
    k1, k2, k3, k4, k5 = jax.random.split(key, 5)
    w1, b1 = _linear_params(k1, emb_size, h_size)
    w2, b2 = _linear_params(k2, h_size, h_size)
    w3, b3 = _linear_params(k3, h_size, n_vocab)
    # Non-trivial BatchNorm running stats / affine params so the BN path is
    # actually exercised (PyTorch init would be mean=0, var=1, g=1, b=0).
    ka, kb_, kc, kd = jax.random.split(k4, 4)
    bn1_g = 1.0 + 0.1 * jax.random.normal(ka, (h_size,), jnp.float32)
    bn1_b = 0.1 * jax.random.normal(kb_, (h_size,), jnp.float32)
    bn1_mean = 0.1 * jax.random.normal(kc, (h_size,), jnp.float32)
    bn1_var = jax.random.uniform(kd, (h_size,), jnp.float32, 0.5, 1.5)
    ka, kb_, kc, kd = jax.random.split(k5, 4)
    bn2_g = 1.0 + 0.1 * jax.random.normal(ka, (h_size,), jnp.float32)
    bn2_b = 0.1 * jax.random.normal(kb_, (h_size,), jnp.float32)
    bn2_mean = 0.1 * jax.random.normal(kc, (h_size,), jnp.float32)
    bn2_var = jax.random.uniform(kd, (h_size,), jnp.float32, 0.5, 1.5)
    return dict(
        w1=w1, b1=b1, bn1_g=bn1_g, bn1_b=bn1_b, bn1_mean=bn1_mean, bn1_var=bn1_var,
        w2=w2, b2=b2, bn2_g=bn2_g, bn2_b=bn2_b, bn2_mean=bn2_mean, bn2_var=bn2_var,
        w3=w3, b3=b3,
    )


def classifier_ref(x, p, eps=BN_EPS):
    """Pure-JAX reference (inference-mode BN, dropout = identity)."""
    h = x @ p["w1"] + p["b1"]
    h = (h - p["bn1_mean"]) * jax.lax.rsqrt(p["bn1_var"] + eps) * p["bn1_g"] + p["bn1_b"]
    h = jnp.maximum(h, 0.0)
    h = h @ p["w2"] + p["b2"]
    h = (h - p["bn2_mean"]) * jax.lax.rsqrt(p["bn2_var"] + eps) * p["bn2_g"] + p["bn2_b"]
    h = jnp.maximum(h, 0.0)
    return h @ p["w3"] + p["b3"]


if __name__ == "__main__":
    # Small shapes consistent with the module.
    B, EMB, H, V = 16, 32, 64, 100

    key = jax.random.PRNGKey(0)
    kx, kp = jax.random.split(key)
    x = jax.random.normal(kx, (B, EMB), jnp.float32)
    params = init_classifier_params(kp, emb_size=EMB, n_vocab=V, h_size=H)

    prep = prepare_classifier_params(params)        # one-time param prep
    out = classifier_forward(x, prep)
    jax.block_until_ready(out)
    assert out.shape == (B, V)

    ref = classifier_ref(x, params)
    assert jnp.allclose(out, ref, rtol=2e-2, atol=2e-2), "mismatch vs reference"

    print("KERNEL_OK")
</pallas_src>

<mosaic_0001>
module attributes {stable_mosaic.version = 11 : i64} {
  func.func @classifier_kernel(%arg0: i32, %arg1: i32, %arg2: memref<8x128xf32, #tpu.memory_space<vmem>>, %arg3: memref<128x128xbf16, #tpu.memory_space<vmem>>, %arg4: memref<1x128xf32, #tpu.memory_space<vmem>>, %arg5: memref<128x128xbf16, #tpu.memory_space<vmem>>, %arg6: memref<1x128xf32, #tpu.memory_space<vmem>>, %arg7: memref<128x128xbf16, #tpu.memory_space<vmem>>, %arg8: memref<1x128xf32, #tpu.memory_space<vmem>>, %arg9: memref<8x128xf32, #tpu.memory_space<vmem>>, %arg10: memref<8x128xbf16, #tpu.memory_space<vmem>>) attributes {dimension_semantics = [#tpu.dimension_semantics<parallel>, #tpu.dimension_semantics<arbitrary>], iteration_bounds = array<i64: 2, 1>, scalar_prefetch = 0 : i64, scratch_operands = 1 : i64, tpu.core_type = #tpu.core_type<tc>, window_params = [{transform_indices = @transform_0, window_bounds = array<i64: 8, 128>}, {pipeline_mode = #tpu.pipeline_mode<synchronous>, transform_indices = @transform_1, window_bounds = array<i64: 128, 128>}, {pipeline_mode = #tpu.pipeline_mode<synchronous>, transform_indices = @transform_2, window_bounds = array<i64: 1, 128>}, {pipeline_mode = #tpu.pipeline_mode<synchronous>, transform_indices = @transform_3, window_bounds = array<i64: 128, 128>}, {pipeline_mode = #tpu.pipeline_mode<synchronous>, transform_indices = @transform_4, window_bounds = array<i64: 1, 128>}, {transform_indices = @transform_5, window_bounds = array<i64: 128, 128>}, {transform_indices = @transform_6, window_bounds = array<i64: 1, 128>}, {transform_indices = @transform_7, window_bounds = array<i64: 8, 128>}]} {
    %c0_i32 = arith.constant 0 : i32
    %0 = arith.cmpi eq, %arg1, %c0_i32 : i32
    %1 = arith.extui %0 : i1 to i32
    %c0_i32_0 = arith.constant 0 : i32
    %2 = arith.cmpi ne, %1, %c0_i32_0 : i32
    scf.if %2 {
      %c0_8 = arith.constant 0 : index
      %c0_9 = arith.constant 0 : index
      %10 = vector.load %arg2[%c0_8, %c0_9] : memref<8x128xf32, #tpu.memory_space<vmem>>, vector<8x128xf32>
      %11 = arith.truncf %10 : vector<8x128xf32> to vector<8x128xbf16>
      %c0_10 = arith.constant 0 : index
      %c0_11 = arith.constant 0 : index
      %12 = vector.load %arg3[%c0_10, %c0_11] : memref<128x128xbf16, #tpu.memory_space<vmem>>, vector<128x128xbf16>
      %cst_12 = arith.constant dense<0.000000e+00> : vector<8x128xf32>
      %13 = tpu.matmul %11, %12, %cst_12 {dimension_numbers = #tpu.dot_dimension_numbers<[1], [0], [0], [1], [0, 0, 1, 1], [], []>} : vector<8x128xbf16>, vector<128x128xbf16>, vector<8x128xf32> -> vector<8x128xf32>
      %c0_13 = arith.constant 0 : index
      %c0_14 = arith.constant 0 : index
      %14 = vector.load %arg4[%c0_13, %c0_14] : memref<1x128xf32, #tpu.memory_space<vmem>>, vector<1x128xf32>
      %15 = vector.broadcast %14 : vector<1x128xf32> to vector<8x128xf32>
      %16 = arith.addf %13, %15 : vector<8x128xf32>
      %cst_15 = arith.constant 0.000000e+00 : f32
      %17 = vector.broadcast %cst_15 : f32 to vector<8x128xf32>
      %18 = arith.maximumf %16, %17 : vector<8x128xf32>
      %19 = arith.truncf %18 : vector<8x128xf32> to vector<8x128xbf16>
      %c0_16 = arith.constant 0 : index
      %c0_17 = arith.constant 0 : index
      %20 = vector.load %arg5[%c0_16, %c0_17] : memref<128x128xbf16, #tpu.memory_space<vmem>>, vector<128x128xbf16>
      %cst_18 = arith.constant dense<0.000000e+00> : vector<8x128xf32>
      %21 = tpu.matmul %19, %20, %cst_18 {dimension_numbers = #tpu.dot_dimension_numbers<[1], [0], [0], [1], [0, 0, 1, 1], [], []>} : vector<8x128xbf16>, vector<128x128xbf16>, vector<8x128xf32> -> vector<8x128xf32>
      %c0_19 = arith.constant 0 : index
      %c0_20 = arith.constant 0 : index
      %22 = vector.load %arg6[%c0_19, %c0_20] : memref<1x128xf32, #tpu.memory_space<vmem>>, vector<1x128xf32>
      %23 = vector.broadcast %22 : vector<1x128xf32> to vector<8x128xf32>
      %24 = arith.addf %21, %23 : vector<8x128xf32>
      %cst_21 = arith.constant 0.000000e+00 : f32
      %25 = vector.broadcast %cst_21 : f32 to vector<8x128xf32>
      %26 = arith.maximumf %24, %25 : vector<8x128xf32>
      %27 = arith.truncf %26 : vector<8x128xf32> to vector<8x128xbf16>
      %c0_22 = arith.constant 0 : index
      %c0_23 = arith.constant 0 : index
      %28 = vector.load %arg10[%c0_22, %c0_23] : memref<8x128xbf16, #tpu.memory_space<vmem>>, vector<8x128xbf16>
      tpu.vector_store %arg10[%c0_22, %c0_23], %27 {strides = array<i32>} : memref<8x128xbf16, #tpu.memory_space<vmem>>, vector<8x128xbf16>,
    } else {
    }
    %c0 = arith.constant 0 : index
    %c0_1 = arith.constant 0 : index
    %3 = vector.load %arg10[%c0, %c0_1] : memref<8x128xbf16, #tpu.memory_space<vmem>>, vector<8x128xbf16>
    %c0_2 = arith.constant 0 : index
    %c0_3 = arith.constant 0 : index
    %4 = vector.load %arg7[%c0_2, %c0_3] : memref<128x128xbf16, #tpu.memory_space<vmem>>, vector<128x128xbf16>
    %cst = arith.constant dense<0.000000e+00> : vector<8x128xf32>
    %5 = tpu.matmul %3, %4, %cst {dimension_numbers = #tpu.dot_dimension_numbers<[1], [0], [0], [1], [0, 0, 1, 1], [], []>} : vector<8x128xbf16>, vector<128x128xbf16>, vector<8x128xf32> -> vector<8x128xf32>
    %c0_4 = arith.constant 0 : index
    %c0_5 = arith.constant 0 : index
    %6 = vector.load %arg8[%c0_4, %c0_5] : memref<1x128xf32, #tpu.memory_space<vmem>>, vector<1x128xf32>
    %7 = vector.broadcast %6 : vector<1x128xf32> to vector<8x128xf32>
    %8 = arith.addf %5, %7 : vector<8x128xf32>
    %c0_6 = arith.constant 0 : index
    %c0_7 = arith.constant 0 : index
    %9 = vector.load %arg9[%c0_6, %c0_7] : memref<8x128xf32, #tpu.memory_space<vmem>>, vector<8x128xf32>
    tpu.vector_store %arg9[%c0_6, %c0_7], %8 {strides = array<i32>} : memref<8x128xf32, #tpu.memory_space<vmem>>, vector<8x128xf32>,
    return
  }
  func.func @transform_0(%arg0: i32, %arg1: i32) -> (i32, i32) {
    %c0_i32 = arith.constant 0 : i32
    %c0_i32_0 = arith.constant 0 : i32
    return %arg0, %c0_i32 : i32, i32
  }
  func.func @transform_1(%arg0: i32, %arg1: i32) -> (i32, i32) {
    %c0_i32 = arith.constant 0 : i32
    %c0_i32_0 = arith.constant 0 : i32
    %c0_i32_1 = arith.constant 0 : i32
    return %c0_i32, %c0_i32_0 : i32, i32
  }
  func.func @transform_2(%arg0: i32, %arg1: i32) -> (i32, i32) {
    %c0_i32 = arith.constant 0 : i32
    %c0_i32_0 = arith.constant 0 : i32
    %c0_i32_1 = arith.constant 0 : i32
    return %c0_i32, %c0_i32_0 : i32, i32
  }
  func.func @transform_3(%arg0: i32, %arg1: i32) -> (i32, i32) {
    %c0_i32 = arith.constant 0 : i32
    %c0_i32_0 = arith.constant 0 : i32
    %c0_i32_1 = arith.constant 0 : i32
    return %c0_i32, %c0_i32_0 : i32, i32
  }
  func.func @transform_4(%arg0: i32, %arg1: i32) -> (i32, i32) {
    %c0_i32 = arith.constant 0 : i32
    %c0_i32_0 = arith.constant 0 : i32
    %c0_i32_1 = arith.constant 0 : i32
    return %c0_i32, %c0_i32_0 : i32, i32
  }
  func.func @transform_5(%arg0: i32, %arg1: i32) -> (i32, i32) {
    %c0_i32 = arith.constant 0 : i32
    %c0_i32_0 = arith.constant 0 : i32
    return %c0_i32, %arg1 : i32, i32
  }
  func.func @transform_6(%arg0: i32, %arg1: i32) -> (i32, i32) {
    %c0_i32 = arith.constant 0 : i32
    %c0_i32_0 = arith.constant 0 : i32
    return %c0_i32, %arg1 : i32, i32
  }
  func.func @transform_7(%arg0: i32, %arg1: i32) -> (i32, i32) {
    %c0_i32 = arith.constant 0 : i32
    return %arg0, %arg1 : i32, i32
  }
}

</mosaic_0001>

<llo_original>
// kernel: tpu_custom_call.1
$region0: #{tpu_custom_call.1}
  #allocation0 [shape = 'u32[]', space=smem, size = 0x4, offset = 0x4, fixed_abs, tag = 'smem constant byte address 0x4 - core index']
  #allocation1 [shape = 'u32[72,128]{1,0:T(1,128)}', space=vmem, size = 0x9000, scoped, tag = 'internal scratch']
  #allocation2 [shape = 'bf16[8,128]{1,0:T(8,128)(2,1)}', space=vmem, size = 0x800, scoped, tag = 'scratch operand']
  %s0 = inlined_call_operand.hbm [shape: f32[16,128], index: 0, kind: input, shape index: {}]
  %s1 = inlined_call_operand.hbm [shape: bf16[128,128], index: 1, kind: input, shape index: {}]
  %s2 = inlined_call_operand.vmem [shape: f32[1,128], index: 2, kind: input, shape index: {}]
  %s3 = inlined_call_operand.hbm [shape: bf16[128,128], index: 3, kind: input, shape index: {}]
  %s4 = inlined_call_operand.vmem [shape: f32[1,128], index: 4, kind: input, shape index: {}]
  %s5 = inlined_call_operand.hbm [shape: bf16[128,128], index: 5, kind: input, shape index: {}]
  %s6 = inlined_call_operand.vmem [shape: f32[1,128], index: 6, kind: input, shape index: {}]
  %s7 = inlined_call_operand.hbm [shape: f32[16,128], index: 7, kind: output, shape index: {}]
  %s8 = sld [smem:[#allocation0]]
  $region81: #{tpu_custom_call.1} parent=0
    _
  %s10 = ssub.s32 1, %s8
  %s11 = scalar_select 0, %s10, %s8
  $region1: #{tpu_custom_call.1} parent=0
    #allocation3 [shape = 'u8[8192]{0}', space=vmem, size = 0x2000, scoped, tag = 'input window, operand 0']
    #allocation4 [shape = 's32[2]{0}', space=sflag, size = 0x8, scoped, tag = 'scoped memory for tpu_custom_call.1']
    #allocation5 [shape = 's32[2]{0}', space=sflag, size = 0x8, scoped, tag = 'scoped memory for tpu_custom_call.1']
    #allocation6 [shape = 'u8[32768]{0}', space=vmem, size = 0x8000, scoped, tag = 'input window, operand 1, single buffered']
    #allocation7 [shape = 's32[1]{0}', space=sflag, size = 0x4, scoped, tag = 'scoped memory for tpu_custom_call.1']
    #allocation8 [shape = 'u8[32768]{0}', space=vmem, size = 0x8000, scoped, tag = 'input window, operand 3, single buffered']
    #allocation9 [shape = 'u8[32768]{0}', space=vmem, size = 0x8000, scoped, tag = 'input window, operand 5, single buffered']
    #allocation10 [shape = 's32[1]{0}', space=sflag, size = 0x4, scoped, tag = 'scoped memory for tpu_custom_call.1']
    #allocation11 [shape = 'u8[8192]{0}', space=vmem, size = 0x2000, scoped, tag = 'output window, operand 0']
    %12 = vsyncpa [#allocation4], 0
    %s13 = scalar_lea.sflag [#allocation4], 1
    %14 = vsyncpa %s13, 0
    %15 = vsyncpa [#allocation7], 0
    %16 = vsyncpa [#allocation10], 0
    %17 = vsyncpa [#allocation5], 0
    %s18 = scalar_lea.sflag [#allocation5], 1
    %19 = vsyncpa %s18, 0
    loop: start=0, step=1, limit=4
    $region2: #{tpu_custom_call.1} parent=1 // loop_pre_header
      _
    $region3: #{tpu_custom_call.1} parent=1 // loop_header
      %s21 = sphi 0, %s25
      %p22 = scmp.ge.s32.totalorder %s21, 4
      %s28 = sphi 0, %s40
      %s29 = sphi 0, %s36
      %s30 = sphi 0, %s28
      %s31 = sphi 0, %s29
      %s32 = sphi 0, %s30
      %s33 = sphi 0, %s31
      %s43 = sphi 0, %s45
      %s46 = sphi 0, %s43
      %s47 = sphi 0, %s46
      %s63 = sphi 0, %s47
      %s67 = sphi 0, %s67
      %s69 = sphi 0, %s67
      %s70 = sphi 0, %s69
      %s84 = sphi 0, %s70
      %s88 = sphi 0, %s88
      %s90 = sphi 0, %s88
      %s91 = sphi 0, %s90
      %s105 = sphi 0, %s91
      %s109 = sphi 0, %s109
      %s111 = sphi 0, %s109
      %s112 = sphi 0, %s111
      %s126 = sphi 0, %s112
      %s130 = sphi 0, %s130
      %s132 = sphi 0, %s130
      %s133 = sphi 0, %s132
      %s147 = sphi 0, %s133
      %s153 = sphi 0, %s155
      %s156 = sphi 0, %s153
      %s157 = sphi 0, %s156
      %s173 = sphi 0, %s157
      %s179 = sphi 0, %s181
      %s182 = sphi 0, %s179
      %s183 = sphi 0, %s182
      %s199 = sphi 0, %s183
      %s207 = sphi 0, %s209
      %s210 = sphi 0, %s207
      %s211 = sphi 0, %s210
      %s227 = sphi 0, %s211
    $region4: #{tpu_custom_call.1} parent=1 // loop_header_branch
      %24 = sbr.rel (%p22) target = $region8
    $region5: #{tpu_custom_call.1} parent=1 // loop_body
      %s26 = ssub.s32 %s21, 1
      %s27 = ssub.s32 %s21, 2
      %s34 = sadd.s32 1, %s29
      %p35 = scmp.ge.s32.totalorder %s34, 1
      %s36 = scalar_select %p35, 0, %s34
      %s37 = sadd.s32 1, %s28
      %s38 = scalar_select %p35, %s37, %s28
      %p39 = scmp.ge.s32.totalorder %s38, 2
      %s40 = scalar_select %p39, 0, %s38
      %s41 = ssub.s32 %s28, %s40
      %p42 = scmp.eq.s32.totalorder %s41, 0
      %s44 = sadd.s32 %s43, 1
      %s45 = scalar_select %p42, %s43, %s44
      %p48 = pneg %p42
      %p49 = scmp.eq.s32.totalorder %s21, 1
      %p50 = por %p48, %p49
      %p51 = scmp.ne.s32.totalorder %s43, %s46
      %p52 = scmp.eq.s32.totalorder %s21, 0
      %p53 = por %p51, %p52
      %p54 = scmp.ne.s32.totalorder %s43, %s46
      %p55 = scmp.eq.s32.totalorder %s26, 1
      %p56 = por %p54, %p55
      %p57 = scmp.ne.s32.totalorder %s46, %s47
      %p58 = scmp.eq.s32.totalorder %s26, 0
      %p59 = por %p57, %p58
      %p60 = scmp.ne.s32.totalorder %s46, %s47
      %p61 = scmp.eq.s32.totalorder %s27, 1
      %p62 = por %p60, %p61
      %p64 = scmp.ne.s32.totalorder %s47, %s63
      %p65 = scmp.eq.s32.totalorder %s27, 0
      %p66 = por %p64, %p65
      %s68 = sadd.s32 %s67, 1
      %p71 = scmp.eq.s32.totalorder %s21, 1
      %p72 = scmp.ne.s32.totalorder %s67, %s69
      %p73 = scmp.eq.s32.totalorder %s21, 0
      %p74 = por %p72, %p73
      %p75 = scmp.ne.s32.totalorder %s67, %s69
      %p76 = scmp.eq.s32.totalorder %s26, 1
      %p77 = por %p75, %p76
      %p78 = scmp.ne.s32.totalorder %s69, %s70
      %p79 = scmp.eq.s32.totalorder %s26, 0
      %p80 = por %p78, %p79
      %p81 = scmp.ne.s32.totalorder %s69, %s70
      %p82 = scmp.eq.s32.totalorder %s27, 1
      %p83 = por %p81, %p82
      %p85 = scmp.ne.s32.totalorder %s70, %s84
      %p86 = scmp.eq.s32.totalorder %s27, 0
      %p87 = por %p85, %p86
      %s89 = sadd.s32 %s88, 1
      %p92 = scmp.eq.s32.totalorder %s21, 1
      %p93 = scmp.ne.s32.totalorder %s88, %s90
      %p94 = scmp.eq.s32.totalorder %s21, 0
      %p95 = por %p93, %p94
      %p96 = scmp.ne.s32.totalorder %s88, %s90
      %p97 = scmp.eq.s32.totalorder %s26, 1
      %p98 = por %p96, %p97
      %p99 = scmp.ne.s32.totalorder %s90, %s91
      %p100 = scmp.eq.s32.totalorder %s26, 0
      %p101 = por %p99, %p100
      %p102 = scmp.ne.s32.totalorder %s90, %s91
      %p103 = scmp.eq.s32.totalorder %s27, 1
      %p104 = por %p102, %p103
      %p106 = scmp.ne.s32.totalorder %s91, %s105
      %p107 = scmp.eq.s32.totalorder %s27, 0
      %p108 = por %p106, %p107
      %s110 = sadd.s32 %s109, 1
      %p113 = scmp.eq.s32.totalorder %s21, 1
      %p114 = scmp.ne.s32.totalorder %s109, %s111
      %p115 = scmp.eq.s32.totalorder %s21, 0
      %p116 = por %p114, %p115
      %p117 = scmp.ne.s32.totalorder %s109, %s111
      %p118 = scmp.eq.s32.totalorder %s26, 1
      %p119 = por %p117, %p118
      %p120 = scmp.ne.s32.totalorder %s111, %s112
      %p121 = scmp.eq.s32.totalorder %s26, 0
      %p122 = por %p120, %p121
      %p123 = scmp.ne.s32.totalorder %s111, %s112
      %p124 = scmp.eq.s32.totalorder %s27, 1
      %p125 = por %p123, %p124
      %p127 = scmp.ne.s32.totalorder %s112, %s126
      %p128 = scmp.eq.s32.totalorder %s27, 0
      %p129 = por %p127, %p128
      %s131 = sadd.s32 %s130, 1
      %p134 = scmp.eq.s32.totalorder %s21, 1
      %p135 = scmp.ne.s32.totalorder %s130, %s132
      %p136 = scmp.eq.s32.totalorder %s21, 0
      %p137 = por %p135, %p136
      %p138 = scmp.ne.s32.totalorder %s130, %s132
      %p139 = scmp.eq.s32.totalorder %s26, 1
      %p140 = por %p138, %p139
      %p141 = scmp.ne.s32.totalorder %s132, %s133
      %p142 = scmp.eq.s32.totalorder %s26, 0
      %p143 = por %p141, %p142
      %p144 = scmp.ne.s32.totalorder %s132, %s133
      %p145 = scmp.eq.s32.totalorder %s27, 1
      %p146 = por %p144, %p145
      %p148 = scmp.ne.s32.totalorder %s133, %s147
      %p149 = scmp.eq.s32.totalorder %s27, 0
      %p150 = por %p148, %p149
      %s151 = ssub.s32 %s29, %s36
      %p152 = scmp.eq.s32.totalorder %s151, 0
      %s154 = sadd.s32 %s153, 1
      %s155 = scalar_select %p152, %s153, %s154
      %p158 = pneg %p152
      %p159 = scmp.eq.s32.totalorder %s21, 1
      %p160 = por %p158, %p159
      %p161 = scmp.ne.s32.totalorder %s153, %s156
      %p162 = scmp.eq.s32.totalorder %s21, 0
      %p163 = por %p161, %p162
      %p164 = scmp.ne.s32.totalorder %s153, %s156
      %p165 = scmp.eq.s32.totalorder %s26, 1
      %p166 = por %p164, %p165
      %p167 = scmp.ne.s32.totalorder %s156, %s157
      %p168 = scmp.eq.s32.totalorder %s26, 0
      %p169 = por %p167, %p168
      %p170 = scmp.ne.s32.totalorder %s156, %s157
      %p171 = scmp.eq.s32.totalorder %s27, 1
      %p172 = por %p170, %p171
      %p174 = scmp.ne.s32.totalorder %s157, %s173
      %p175 = scmp.eq.s32.totalorder %s27, 0
      %p176 = por %p174, %p175
      %s177 = ssub.s32 %s29, %s36
      %p178 = scmp.eq.s32.totalorder %s177, 0
      %s180 = sadd.s32 %s179, 1
      %s181 = scalar_select %p178, %s179, %s180
      %p184 = pneg %p178
      %p185 = scmp.eq.s32.totalorder %s21, 1
      %p186 = por %p184, %p185
      %p187 = scmp.ne.s32.totalorder %s179, %s182
      %p188 = scmp.eq.s32.totalorder %s21, 0
      %p189 = por %p187, %p188
      %p190 = scmp.ne.s32.totalorder %s179, %s182
      %p191 = scmp.eq.s32.totalorder %s26, 1
      %p192 = por %p190, %p191
      %p193 = scmp.ne.s32.totalorder %s182, %s183
      %p194 = scmp.eq.s32.totalorder %s26, 0
      %p195 = por %p193, %p194
      %p196 = scmp.ne.s32.totalorder %s182, %s183
      %p197 = scmp.eq.s32.totalorder %s27, 1
      %p198 = por %p196, %p197
      %p200 = scmp.ne.s32.totalorder %s183, %s199
      %p201 = scmp.eq.s32.totalorder %s27, 0
      %p202 = por %p200, %p201
      %s203 = ssub.s32 %s28, %s40
      %s204 = ssub.s32 %s29, %s36
      %s205 = sor.u32 %s203, %s204
      %p206 = scmp.eq.s32.totalorder %s205, 0
      %s208 = sadd.s32 %s207, 1
      %s209 = scalar_select %p206, %s207, %s208
      %p212 = pneg %p206
      %p213 = scmp.eq.s32.totalorder %s21, 1
      %p214 = por %p212, %p213
      %p215 = scmp.ne.s32.totalorder %s207, %s210
      %p216 = scmp.eq.s32.totalorder %s21, 0
      %p217 = por %p215, %p216
      %p218 = scmp.ne.s32.totalorder %s207, %s210
      %p219 = scmp.eq.s32.totalorder %s26, 1
      %p220 = por %p218, %p219
      %p221 = scmp.ne.s32.totalorder %s210, %s211
      %p222 = scmp.eq.s32.totalorder %s26, 0
      %p223 = por %p221, %p222
      %p224 = scmp.ne.s32.totalorder %s210, %s211
      %p225 = scmp.eq.s32.totalorder %s27, 1
      %p226 = por %p224, %p225
      %p228 = scmp.ne.s32.totalorder %s211, %s227
      %p229 = scmp.eq.s32.totalorder %s27, 0
      %p230 = por %p228, %p229
      %p231 = scmp.le.s32.totalorder 1, %s21
      %p232 = scmp.lt.s32.totalorder %s21, 3
      %p233 = pnand %p231, %p232
      %p234 = pneg %p233
      // Predicated region
      $region9: #{tpu_custom_call.1} parent=5 // pred_check
        _
      $region10: #{tpu_custom_call.1} parent=5 // pred_check_branch
        %236 = sbr.rel (%p233) target = $region12
      $region11: #{tpu_custom_call.1} parent=5 // pred_region
        %s237 = ssub.s32 %s21, 1
        // Predicated region
        $region13: #{tpu_custom_call.1} parent=11 // pred_check
          %p238 = pneg %p80
        $region14: #{tpu_custom_call.1} parent=11 // pred_check_branch
          %240 = sbr.rel (%p238) target = $region16
        $region15: #{tpu_custom_call.1} parent=11 // pred_region
          %242 = vsyncadd [#allocation7], 0
          %s243 = sshll.u32 %s1, 4
          %s244 = int_to_ptr.hbm [resolvable:$true] %s243
          %s245 = sshll.u32 [#allocation6], 4
          %s246 = int_to_ptr.vmem [resolvable:$true] %s245
          %251 = dma.hbm_to_vmem [thread:$0]  %s244, 1024, %s246, [#allocation7], 64, 64, 4
        $region16: #{tpu_custom_call.1} parent=11 // pred_fallthru
          _
        // Predicated region
        $region17: #{tpu_custom_call.1} parent=11 // pred_check
          %p252 = pneg %p101
        $region18: #{tpu_custom_call.1} parent=11 // pred_check_branch
          %254 = sbr.rel (%p252) target = $region20
        $region19: #{tpu_custom_call.1} parent=11 // pred_region
          _
        $region20: #{tpu_custom_call.1} parent=11 // pred_fallthru
          _
        // Predicated region
        $region21: #{tpu_custom_call.1} parent=11 // pred_check
          %p255 = pneg %p122
        $region22: #{tpu_custom_call.1} parent=11 // pred_check_branch
          %257 = sbr.rel (%p255) target = $region24
        $region23: #{tpu_custom_call.1} parent=11 // pred_region
          %259 = vsyncadd [#allocation7], 0
          %s260 = sshll.u32 %s3, 4
          %s261 = int_to_ptr.hbm [resolvable:$true] %s260
          %s262 = sshll.u32 [#allocation8], 4
          %s263 = int_to_ptr.vmem [resolvable:$true] %s262
          %268 = dma.hbm_to_vmem [thread:$0]  %s261, 1024, %s263, [#allocation7], 64, 64, 4
        $region24: #{tpu_custom_call.1} parent=11 // pred_fallthru
          _
        // Predicated region
        $region25: #{tpu_custom_call.1} parent=11 // pred_check
          %p269 = pneg %p143
        $region26: #{tpu_custom_call.1} parent=11 // pred_check_branch
          %271 = sbr.rel (%p269) target = $region28
        $region27: #{tpu_custom_call.1} parent=11 // pred_region
          _
        $region28: #{tpu_custom_call.1} parent=11 // pred_fallthru
          _
        // Predicated region
        $region29: #{tpu_custom_call.1} parent=11 // pred_check
          %p272 = pneg %p169
        $region30: #{tpu_custom_call.1} parent=11 // pred_check_branch
          %274 = sbr.rel (%p272) target = $region32
        $region31: #{tpu_custom_call.1} parent=11 // pred_region
          %276 = vsyncadd [#allocation10], 0
          %s277 = smul.addr %s31, 4
          %s278 = scalar_lea.hbm %s5, %s277
          %s279 = sshll.u32 %s278, 4
          %s280 = int_to_ptr.hbm [resolvable:$true] %s279
          %s281 = sshll.u32 [#allocation9], 4
          %s282 = int_to_ptr.vmem [resolvable:$true] %s281
          %287 = dma.hbm_to_vmem [thread:$0]  %s280, 1024, %s282, [#allocation10], 64, 64, 4
        $region32: #{tpu_custom_call.1} parent=11 // pred_fallthru
          _
        // Predicated region
        $region33: #{tpu_custom_call.1} parent=11 // pred_check
          %p288 = pneg %p195
        $region34: #{tpu_custom_call.1} parent=11 // pred_check_branch
          %290 = sbr.rel (%p288) target = $region36
        $region35: #{tpu_custom_call.1} parent=11 // pred_region
          %p291 = scmp.lt.s32.totalorder %s31, 0
          %s292 = scalar_select %p291, %s31, 0
          %s293 = scalar_lea.vmem %s6, %s292
        $region36: #{tpu_custom_call.1} parent=11 // pred_fallthru
          _
      $region12: #{tpu_custom_call.1} parent=5 // pred_fallthru
        _
      %p294 = scmp.lt.s32.totalorder %s21, 2
      // Predicated region
      $region37: #{tpu_custom_call.1} parent=5 // pred_check
        %p295 = pneg %p294
      $region38: #{tpu_custom_call.1} parent=5 // pred_check_branch
        %297 = sbr.rel (%p295) target = $region40
      $region39: #{tpu_custom_call.1} parent=5 // pred_region
        // Predicated region
        $region41: #{tpu_custom_call.1} parent=39 // pred_check
          %p298 = pneg %p53
        $region42: #{tpu_custom_call.1} parent=39 // pred_check_branch
          %300 = sbr.rel (%p298) target = $region44
        $region43: #{tpu_custom_call.1} parent=39 // pred_region
          %s301 = sand.u32 %s43, 1
          %s302 = scalar_lea.sflag [#allocation4], %s301
          %s303 = sand.u32 %s43, 1
          %s304 = smul.addr %s303, 8
          %s305 = scalar_lea.vmem [#allocation3], %s304
          %307 = vsyncadd %s302, 0
          %s308 = smul.addr %s28, 8
          %s309 = scalar_lea.hbm %s0, %s308
          %s311 = sshll.u32 %s309, 4
          %s312 = int_to_ptr.hbm [resolvable:$true] %s311
          %s313 = sshll.u32 %s305, 4
          %s314 = int_to_ptr.vmem [resolvable:$true] %s313
          %316 = dma.hbm_to_vmem [thread:$0]  %s312, 128, %s314, %s302
        $region44: #{tpu_custom_call.1} parent=39 // pred_fallthru
          _
      $region40: #{tpu_custom_call.1} parent=5 // pred_fallthru
        _
      %p317 = scmp.le.s32.totalorder 1, %s21
      %p318 = scmp.lt.s32.totalorder %s21, 3
      %p319 = pnand %p317, %p318
      %p320 = pneg %p319
      // Predicated region
      $region45: #{tpu_custom_call.1} parent=5 // pred_check
        _
      $region46: #{tpu_custom_call.1} parent=5 // pred_check_branch
        %322 = sbr.rel (%p319) target = $region48
      $region47: #{tpu_custom_call.1} parent=5 // pred_region
        %s323 = ssub.s32 %s21, 1
        %s324 = sand.u32 %s46, 1
        %s325 = scalar_lea.sflag [#allocation4], %s324
        %s326 = sand.u32 %s46, 1
        %s327 = smul.addr %s326, 8
        %s328 = scalar_lea.vmem [#allocation3], %s327
        // Predicated region
        $region49: #{tpu_custom_call.1} parent=47 // pred_check
          %p329 = pneg %p59
        $region50: #{tpu_custom_call.1} parent=47 // pred_check_branch
          %331 = sbr.rel (%p329) target = $region52
        $region51: #{tpu_custom_call.1} parent=47 // pred_region
          %333 = dma.done %s325, 128
        $region52: #{tpu_custom_call.1} parent=47 // pred_fallthru
          _
        // Predicated region
        $region53: #{tpu_custom_call.1} parent=47 // pred_check
          %p334 = pneg %p80
        $region54: #{tpu_custom_call.1} parent=47 // pred_check_branch
          %336 = sbr.rel (%p334) target = $region56
        $region55: #{tpu_custom_call.1} parent=47 // pred_region
          %338 = dma.done [#allocation7], 1024
        $region56: #{tpu_custom_call.1} parent=47 // pred_fallthru
          _
        // Predicated region
        $region57: #{tpu_custom_call.1} parent=47 // pred_check
          %p339 = pneg %p122
        $region58: #{tpu_custom_call.1} parent=47 // pred_check_branch
          %341 = sbr.rel (%p339) target = $region60
        $region59: #{tpu_custom_call.1} parent=47 // pred_region
          %343 = dma.done [#allocation7], 1024
        $region60: #{tpu_custom_call.1} parent=47 // pred_fallthru
          _
        // Predicated region
        $region61: #{tpu_custom_call.1} parent=47 // pred_check
          %p344 = pneg %p169
        $region62: #{tpu_custom_call.1} parent=47 // pred_check_branch
          %346 = sbr.rel (%p344) target = $region64
        $region63: #{tpu_custom_call.1} parent=47 // pred_region
          %348 = dma.done [#allocation10], 1024
        $region64: #{tpu_custom_call.1} parent=47 // pred_fallthru
          _
        %s349 = sand.u32 %s46, 1
        %s350 = scalar_lea.sflag [#allocation4], %s349
        %s351 = sand.u32 %s46, 1
        %s352 = smul.addr %s351, 8
        %s353 = scalar_lea.vmem [#allocation3], %s352
        %p354 = pneg %p59
        %p355 = pneg %p56
        %p356 = pneg %p80
        %p357 = pneg %p77
        %p358 = pneg %p101
        %p359 = pneg %p98
        %p360 = pneg %p122
        %p361 = pneg %p119
        %p362 = pneg %p143
        %p363 = pneg %p140
        %p364 = pneg %p169
        %p365 = pneg %p166
        %p366 = scmp.lt.s32.totalorder %s31, 0
        %s367 = scalar_select %p366, %s31, 0
        %s368 = scalar_lea.vmem %s6, %s367
        %p369 = pneg %p195
        %p370 = pneg %p192
        %p371 = pneg %p223
        %p372 = pneg %p220
        %s373 = sand.u32 %s210, 1
        %s374 = scalar_lea.sflag [#allocation5], %s373
        %s375 = sand.u32 %s210, 1
        %s376 = smul.addr %s375, 8
        %s377 = scalar_lea.vmem [#allocation11], %s376
        %p378 = scmp.lt.s32.totalorder %s31, 0
        %s379 = scalar_select %p378, %s31, 0
        %s380 = scalar_lea.vmem %s6, %s379
        %p381 = scmp.eq.s32.totalorder %s31, 0
        // Predicated region
        $region65: #{tpu_custom_call.1} parent=47 // pred_check
          %p382 = pneg %p381
        $region66: #{tpu_custom_call.1} parent=47 // pred_check_branch
          %384 = sbr.rel (%p382) target = $region68
        $region67: #{tpu_custom_call.1} parent=47 // pred_region
          %v385 = vld [vmem:[%s328] sm:$0xff]
          %v386 = vpack.c.bf16 %v385, %v385
          %v387 = vld [vmem:[#allocation6] sm:$0xf]
          %v388 = vld [vmem:[#allocation6 + $0x4] sm:$0xf]
          %v389 = vld [vmem:[#allocation6 + $0x8] sm:$0xf]
          %v390 = vld [vmem:[#allocation6 + $0xc] sm:$0xf]
          %v391 = vld [vmem:[#allocation6 + $0x10] sm:$0xf]
          %v392 = vld [vmem:[#allocation6 + $0x14] sm:$0xf]
          %v393 = vld [vmem:[#allocation6 + $0x18] sm:$0xf]
          %v394 = vld [vmem:[#allocation6 + $0x1c] sm:$0xf]
          %v395 = vld [vmem:[#allocation6 + $0x20] sm:$0xf]
          %v396 = vld [vmem:[#allocation6 + $0x24] sm:$0xf]
          %v397 = vld [vmem:[#allocation6 + $0x28] sm:$0xf]
          %v398 = vld [vmem:[#allocation6 + $0x2c] sm:$0xf]
          %v399 = vld [vmem:[#allocation6 + $0x30] sm:$0xf]
          %v400 = vld [vmem:[#allocation6 + $0x34] sm:$0xf]
          %v401 = vld [vmem:[#allocation6 + $0x38] sm:$0xf]
          %v402 = vld [vmem:[#allocation6 + $0x3c] sm:$0xf]
          %v403 = vld [vmem:[%s2] sm:$0x1]
          %v405 = vperm.slane %v403, 0
          %v423 = vunpack.c.l.b16 %v387
          %v424 = vunpack.c.l.b16 %v388
          %v425 = vunpack.c.l.b16 %v389
          %v426 = vunpack.c.l.b16 %v390
          %v427 = vunpack.c.l.b16 %v391
          %v428 = vunpack.c.l.b16 %v392
          %v429 = vunpack.c.l.b16 %v393
          %v430 = vunpack.c.l.b16 %v394
          %v431 = vunpack.c.l.b16 %v395
          %v432 = vunpack.c.l.b16 %v396
          %v433 = vunpack.c.l.b16 %v397
          %v434 = vunpack.c.l.b16 %v398
          %v435 = vunpack.c.l.b16 %v399
          %v436 = vunpack.c.l.b16 %v400
          %v437 = vunpack.c.l.b16 %v401
          %v438 = vunpack.c.l.b16 %v402
          %v439 = vpack.c.b16 %v424, %v423
          %v440 = vpack.c.b16 %v426, %v425
          %v441 = vpack.c.b16 %v428, %v427
          %v442 = vpack.c.b16 %v430, %v429
          %v443 = vpack.c.b16 %v432, %v431
          %v444 = vpack.c.b16 %v434, %v433
          %v445 = vpack.c.b16 %v436, %v435
          %v446 = vpack.c.b16 %v438, %v437
          %455 = vmatpush.bf16.msra.mxu0 %v446
          %456 = vmatpush.bf16.msra.mxu0 %v445
          %457 = vmatpush.bf16.msra.mxu0 %v444
          %458 = vmatpush.bf16.msra.mxu0 %v443
          %459 = vmatpush.bf16.msra.mxu0 %v442
          %460 = vmatpush.bf16.msra.mxu0 %v441
          %461 = vmatpush.bf16.msra.mxu0 %v440
          %462 = vmatpush.bf16.msra.mxu0 %v439
          %463 = vmatmul.bf16.gmra.mxu0 %v386
          %v464 = vpop.f32.mrf.mxu0
          %v465 = vadd.f32 %v405, %v464
          %v466 = vpop.f32.mrf.mxu0
          %467 = vdwg.mxu0
          %v468 = vmax.f32 %v465, 0.0
          %v469 = vpack.c.bf16 %v468, %v468
          %v470 = vld [vmem:[#allocation8] sm:$0xf]
          %v471 = vld [vmem:[#allocation8 + $0x4] sm:$0xf]
          %v472 = vld [vmem:[#allocation8 + $0x8] sm:$0xf]
          %v473 = vld [vmem:[#allocation8 + $0xc] sm:$0xf]
          %v474 = vld [vmem:[#allocation8 + $0x10] sm:$0xf]
          %v475 = vld [vmem:[#allocation8 + $0x14] sm:$0xf]
          %v476 = vld [vmem:[#allocation8 + $0x18] sm:$0xf]
          %v477 = vld [vmem:[#allocation8 + $0x1c] sm:$0xf]
          %v478 = vld [vmem:[#allocation8 + $0x20] sm:$0xf]
          %v479 = vld [vmem:[#allocation8 + $0x24] sm:$0xf]
          %v480 = vld [vmem:[#allocation8 + $0x28] sm:$0xf]
          %v481 = vld [vmem:[#allocation8 + $0x2c] sm:$0xf]
          %v482 = vld [vmem:[#allocation8 + $0x30] sm:$0xf]
          %v483 = vld [vmem:[#allocation8 + $0x34] sm:$0xf]
          %v484 = vld [vmem:[#allocation8 + $0x38] sm:$0xf]
          %v485 = vld [vmem:[#allocation8 + $0x3c] sm:$0xf]
          %v486 = vld [vmem:[%s4] sm:$0x1]
          %v488 = vperm.slane %v486, 0
          %v506 = vunpack.c.l.b16 %v470
          %v507 = vunpack.c.l.b16 %v471
          %v508 = vunpack.c.l.b16 %v472
          %v509 = vunpack.c.l.b16 %v473
          %v510 = vunpack.c.l.b16 %v474
          %v511 = vunpack.c.l.b16 %v475
          %v512 = vunpack.c.l.b16 %v476
          %v513 = vunpack.c.l.b16 %v477
          %v514 = vunpack.c.l.b16 %v478
          %v515 = vunpack.c.l.b16 %v479
          %v516 = vunpack.c.l.b16 %v480
          %v517 = vunpack.c.l.b16 %v481
          %v518 = vunpack.c.l.b16 %v482
          %v519 = vunpack.c.l.b16 %v483
          %v520 = vunpack.c.l.b16 %v484
          %v521 = vunpack.c.l.b16 %v485
          %v522 = vpack.c.b16 %v507, %v506
          %v523 = vpack.c.b16 %v509, %v508
          %v524 = vpack.c.b16 %v511, %v510
          %v525 = vpack.c.b16 %v513, %v512
          %v526 = vpack.c.b16 %v515, %v514
          %v527 = vpack.c.b16 %v517, %v516
          %v528 = vpack.c.b16 %v519, %v518
          %v529 = vpack.c.b16 %v521, %v520
          %538 = vmatpush.bf16.msra.mxu0 %v529
          %539 = vmatpush.bf16.msra.mxu0 %v528
          %540 = vmatpush.bf16.msra.mxu0 %v527
          %541 = vmatpush.bf16.msra.mxu0 %v526
          %542 = vmatpush.bf16.msra.mxu0 %v525
          %543 = vmatpush.bf16.msra.mxu0 %v524
          %544 = vmatpush.bf16.msra.mxu0 %v523
          %545 = vmatpush.bf16.msra.mxu0 %v522
          %546 = vmatmul.bf16.gmra.mxu0 %v469
          %v547 = vpop.f32.mrf.mxu0
          %v548 = vadd.f32 %v488, %v547
          %v549 = vpop.f32.mrf.mxu0
          %550 = vdwg.mxu0
          %v551 = vmax.f32 %v548, 0.0
          %v552 = vpack.c.bf16 %v551, %v551
          %553 = vst [vmem:[#allocation2] sm:$0xf] %v552
        $region68: #{tpu_custom_call.1} parent=47 // pred_fallthru
          _
        %v554 = vld [vmem:[#allocation2] sm:$0xf]
        %v555 = vld [vmem:[#allocation9] sm:$0xf]
        %v556 = vld [vmem:[#allocation9 + $0x4] sm:$0xf]
        %v557 = vld [vmem:[#allocation9 + $0x8] sm:$0xf]
        %v558 = vld [vmem:[#allocation9 + $0xc] sm:$0xf]
        %v559 = vld [vmem:[#allocation9 + $0x10] sm:$0xf]
        %v560 = vld [vmem:[#allocation9 + $0x14] sm:$0xf]
        %v561 = vld [vmem:[#allocation9 + $0x18] sm:$0xf]
        %v562 = vld [vmem:[#allocation9 + $0x1c] sm:$0xf]
        %v563 = vld [vmem:[#allocation9 + $0x20] sm:$0xf]
        %v564 = vld [vmem:[#allocation9 + $0x24] sm:$0xf]
        %v565 = vld [vmem:[#allocation9 + $0x28] sm:$0xf]
        %v566 = vld [vmem:[#allocation9 + $0x2c] sm:$0xf]
        %v567 = vld [vmem:[#allocation9 + $0x30] sm:$0xf]
        %v568 = vld [vmem:[#allocation9 + $0x34] sm:$0xf]
        %v569 = vld [vmem:[#allocation9 + $0x38] sm:$0xf]
        %v570 = vld [vmem:[#allocation9 + $0x3c] sm:$0xf]
        %v571 = vld [vmem:[%s380] sm:$0x1]
        %v573 = vperm.slane %v571, 0
        %v591 = vunpack.c.l.b16 %v555
        %v592 = vunpack.c.l.b16 %v556
        %v593 = vunpack.c.l.b16 %v557
        %v594 = vunpack.c.l.b16 %v558
        %v595 = vunpack.c.l.b16 %v559
        %v596 = vunpack.c.l.b16 %v560
        %v597 = vunpack.c.l.b16 %v561
        %v598 = vunpack.c.l.b16 %v562
        %v599 = vunpack.c.l.b16 %v563
        %v600 = vunpack.c.l.b16 %v564
        %v601 = vunpack.c.l.b16 %v565
        %v602 = vunpack.c.l.b16 %v566
        %v603 = vunpack.c.l.b16 %v567
        %v604 = vunpack.c.l.b16 %v568
        %v605 = vunpack.c.l.b16 %v569
        %v606 = vunpack.c.l.b16 %v570
        %v607 = vpack.c.b16 %v592, %v591
        %v608 = vpack.c.b16 %v594, %v593
        %v609 = vpack.c.b16 %v596, %v595
        %v610 = vpack.c.b16 %v598, %v597
        %v611 = vpack.c.b16 %v600, %v599
        %v612 = vpack.c.b16 %v602, %v601
        %v613 = vpack.c.b16 %v604, %v603
        %v614 = vpack.c.b16 %v606, %v605
        %623 = vmatpush.bf16.msra.mxu0 %v614
        %624 = vmatpush.bf16.msra.mxu0 %v613
        %625 = vmatpush.bf16.msra.mxu0 %v612
        %626 = vmatpush.bf16.msra.mxu0 %v611
        %627 = vmatpush.bf16.msra.mxu0 %v610
        %628 = vmatpush.bf16.msra.mxu0 %v609
        %629 = vmatpush.bf16.msra.mxu0 %v608
        %630 = vmatpush.bf16.msra.mxu0 %v607
        %631 = vmatmul.bf16.gmra.mxu0 %v554
        %v632 = vpop.f32.mrf.mxu0
        %v633 = vadd.f32 %v573, %v632
        %v634 = vpop.f32.mrf.mxu0
        %635 = vdwg.mxu0
        %636 = vst [vmem:[%s377] sm:$0xff] %v633
        %s637 = sand.u32 %s210, 1
        %s638 = scalar_lea.sflag [#allocation5], %s637
        %s639 = sand.u32 %s210, 1
        %s640 = smul.addr %s639, 8
        %s641 = scalar_lea.vmem [#allocation11], %s640
        // Predicated region
        $region69: #{tpu_custom_call.1} parent=47 // pred_check
          %p642 = pneg %p220
        $region70: #{tpu_custom_call.1} parent=47 // pred_check_branch
          %644 = sbr.rel (%p642) target = $region72
        $region71: #{tpu_custom_call.1} parent=47 // pred_region
          %646 = vsyncadd %s638, 0
          %s647 = sadd.s32 %s31, %s30
          %s648 = smul.addr %s647, 8
          %s649 = scalar_lea.hbm %s7, %s648
          %s651 = sshll.u32 %s641, 4
          %s652 = int_to_ptr.vmem [resolvable:$true] %s651
          %s653 = sshll.u32 %s649, 4
          %s654 = int_to_ptr.hbm [resolvable:$true] %s653
          %656 = dma.vmem_to_hbm [thread:$0]  %s652, 128, %s654, %s638
        $region72: #{tpu_custom_call.1} parent=47 // pred_fallthru
          _
      $region48: #{tpu_custom_call.1} parent=5 // pred_fallthru
        _
      %p657 = scmp.le.s32.totalorder 2, %s21
      // Predicated region
      $region73: #{tpu_custom_call.1} parent=5 // pred_check
        %p658 = pneg %p657
      $region74: #{tpu_custom_call.1} parent=5 // pred_check_branch
        %660 = sbr.rel (%p658) target = $region76
      $region75: #{tpu_custom_call.1} parent=5 // pred_region
        %s661 = ssub.s32 %s21, 2
        // Predicated region
        $region77: #{tpu_custom_call.1} parent=75 // pred_check
          %p662 = pneg %p226
        $region78: #{tpu_custom_call.1} parent=75 // pred_check_branch
          %664 = sbr.rel (%p662) target = $region80
        $region79: #{tpu_custom_call.1} parent=75 // pred_region
          %s665 = sand.u32 %s211, 1
          %s666 = scalar_lea.sflag [#allocation5], %s665
          %s667 = sand.u32 %s211, 1
          %s668 = smul.addr %s667, 8
          %s669 = scalar_lea.vmem [#allocation11], %s668
          %671 = dma.done %s666, 128
        $region80: #{tpu_custom_call.1} parent=75 // pred_fallthru
          _
      $region76: #{tpu_custom_call.1} parent=5 // pred_fallthru
        _
    $region6: #{tpu_custom_call.1} parent=1 // loop_footer
      %s25 = sadd.s32 1, %s21
    $region7: #{tpu_custom_call.1} parent=1 // loop_footer_branch
      %20 = sbr.rel target = $region3
    $region8: #{tpu_custom_call.1} parent=1 // loop_exit
      _
    %672 = vsyncpa [#allocation4], 1
    %s673 = scalar_lea.sflag [#allocation4], 1
    %674 = vsyncpa %s673, 1
    %675 = vsyncpa [#allocation7], 1
    %676 = vsyncpa [#allocation10], 1
    %677 = vsyncpa [#allocation5], 1
    %s678 = scalar_lea.sflag [#allocation5], 1
    %679 = vsyncpa %s678, 1

</llo_original>
